<compile_context>
chip_gen: v7x
topology: tpu7x:2x2x1
jax: 0.10.0
libtpu: 0.0.40
codegen_flags: <defaults>
</compile_context>

<pallas_src>
import functools

import jax
import jax.numpy as jnp
from jax import lax
from jax.experimental import pallas as pl
from jax.experimental.pallas import tpu as pltpu


def _sru_seq_kernel(tok_ref,        # scalar-prefetch (SMEM) int32 token ids, length T_pad
                    emb_ref,        # (vocab, H) f32  VMEM-resident embedding table
                    w_ref,          # (H, 3H)    bf16 VMEM-resident SRU weight
                    b_ref,          # (1, 2H)    f32  resident bias [b_f | b_r]
                    c0_ref,         # (1, H)     f32  initial SRU state
                    h_ref,          # out: (t_tile, H) f32 h block for this tile
                    c_out_ref,      # out: (1, H) f32 resident block = carried state / final c
                    x_scr,          # VMEM (t_tile, H) f32: gathered embeddings
                    c_scr,          # VMEM (t_tile, H) f32: per-step c within the tile
                    *, seq_len, t_tile, hidden):
    i = pl.program_id(0)
    base = i * t_tile
    H = hidden

    @pl.when(i == 0)
    def _init():
        c_out_ref[...] = c0_ref[...]

    # ---- 1) embedding gather: dynamic row loads from the VMEM-resident table ----------
    # TODO(synk): for large vocab keep the table in HBM (memory_space=pl.ANY) and
    #             double-buffer the row-gather DMAs across tiles instead.
    for t in range(t_tile):
        tok = tok_ref[base + t]
        x_scr[pl.ds(t, 1), :] = emb_ref[pl.ds(tok, 1), :]
    x = x_scr[...]                                              # (t_tile, H) f32

    # ---- 2) one batched MXU matmul for the whole time tile ----------------------------
    u = jnp.dot(x.astype(jnp.bfloat16), w_ref[...],
                preferred_element_type=jnp.float32)             # (t_tile, 3H) f32

    # ---- 3) batched gates on full (t_tile, H) slabs (VPU/EUP) -------------------------
    x_tilde = u[:, 0:H]
    f = jax.nn.sigmoid(u[:, H:2 * H] + b_ref[:, 0:H])
    r = jax.nn.sigmoid(u[:, 2 * H:3 * H] + b_ref[:, H:2 * H])
    # Mask padded tail steps (f=1, g=0) so the carried state is exactly c_{T-1}.
    step = base + lax.broadcasted_iota(jnp.int32, (t_tile, H), 0)
    f = jnp.where(step < seq_len, f, 1.0)
    g = (1.0 - f) * x_tilde

    # ---- 4) serial first-order recurrence: one row FMA per step -----------------------
    # TODO(synk): for t_tile >= 64, replace with a log2(t_tile)-depth Hillis-Steele scan
    #             over the sublane (time) axis via pltpu.roll on the f/g slabs.
    c = c_out_ref[...]                                          # (1, H) carried state
    for t in range(t_tile):
        c = f[t:t + 1, :] * c + g[t:t + 1, :]
        c_scr[pl.ds(t, 1), :] = c
    c_out_ref[...] = c                                          # resident final-state output

    # ---- 5) batched highway output + one full-block unmasked store --------------------
    h_ref[...] = r * jnp.tanh(c_scr[...]) + (1.0 - r) * x


def encoder_rnn_sru_sequence(tokens, hidden, cell, emb_w, sru_w, sru_b, *, t_tile=128):
    """Fused decode loop: run the EncoderRNN_SRU forward over a whole token sequence with
    ONE pallas_call. Per-step semantics match the PyTorch module forward (embedding ->
    SRU cell), applied T times with the c state carried.

    tokens: (T,) int32
    hidden: (1, 1, H) f32 (SRU initial state c0) ; cell: unused (parity with the module)
    emb_w:  (vocab, H) f32 ; sru_w: (H, 3H) f32 ; sru_b: (1, 2H) f32
    returns (output, hidden) = ((T, 1, H) h sequence, (1, 1, H) final c)

    t_tile: time-tile size. ~128 for v5e (128x128 MXU), up to 256 for v6e/v7x; it is
    clamped to the (8-padded) sequence length and kept a multiple of 8 (f32 sublane).
    """
    del cell  # not used by the reference forward
    vocab, H = emb_w.shape
    tokens = jnp.asarray(tokens, dtype=jnp.int32).reshape(-1)
    T = int(tokens.shape[0])

    pad8 = ((T + 7) // 8) * 8
    t_tile = max(8, min(int(t_tile), pad8))
    t_tile = ((t_tile + 7) // 8) * 8
    num_tiles = -(-T // t_tile)
    T_pad = num_tiles * t_tile
    toks_pad = jnp.zeros((T_pad,), jnp.int32).at[:T].set(tokens)

    c0 = hidden.reshape(1, H).astype(jnp.float32)
    emb_f32 = emb_w.astype(jnp.float32)          # small vocab -> VMEM-resident table
    w_bf16 = sru_w.astype(jnp.bfloat16)          # halve weight HBM traffic, native MXU rate
    b_f32 = sru_b.astype(jnp.float32).reshape(1, 2 * H)

    kernel = functools.partial(_sru_seq_kernel, seq_len=T, t_tile=t_tile, hidden=H)

    # TODO(synk): on v7x with H >~ 1.5-2K, single-buffer W (pipeline_mode=pl.Buffered(1)),
    #             set vmem_limit_bytes explicitly, and tile the 3H axis; for batched/beamed
    #             decode add a leading "parallel" batch grid axis for the second TensorCore.
    grid_spec = pltpu.PrefetchScalarGridSpec(
        num_scalar_prefetch=1,
        grid=(num_tiles,),
        in_specs=[
            pl.BlockSpec((vocab, H), lambda i, tok: (0, 0)),      # embedding table, resident
            pl.BlockSpec((H, 3 * H), lambda i, tok: (0, 0)),      # W: resident, loaded once
            pl.BlockSpec((1, 2 * H), lambda i, tok: (0, 0)),      # bias: resident
            pl.BlockSpec((1, H), lambda i, tok: (0, 0)),          # c0
        ],
        out_specs=[
            pl.BlockSpec((t_tile, H), lambda i, tok: (i, 0)),     # h sequence (per tile)
            pl.BlockSpec((1, H), lambda i, tok: (0, 0)),          # final c (resident)
        ],
        scratch_shapes=[
            pltpu.VMEM((t_tile, H), jnp.float32),                 # gathered embeddings
            pltpu.VMEM((t_tile, H), jnp.float32),                 # per-step c within tile
        ],
    )

    h_pad, c_final = pl.pallas_call(
        kernel,
        grid_spec=grid_spec,
        out_shape=(jax.ShapeDtypeStruct((T_pad, H), jnp.float32),
                   jax.ShapeDtypeStruct((1, H), jnp.float32)),
        compiler_params=pltpu.CompilerParams(
            dimension_semantics=("arbitrary",)),                  # time recurrence
    )(toks_pad, emb_f32, w_bf16, b_f32, c0)

    h_seq = h_pad[:T].reshape(T, 1, H)
    return h_seq, c_final.reshape(1, 1, H)


def encoder_rnn_sru_forward(token, hidden, cell, emb_w, sru_w, sru_b):
    """Exact module-forward semantics: single token -> (output (1,1,H), hidden (1,1,H))."""
    toks = jnp.asarray(token, dtype=jnp.int32).reshape((1,))
    h_seq, c_final = encoder_rnn_sru_sequence(toks, hidden, cell, emb_w, sru_w, sru_b)
    return h_seq.reshape(1, 1, -1), c_final


def reference_sequence(tokens, hidden, emb_w, sru_w, sru_b):
    """Pure-JAX reference (same bf16 weight rounding as the kernel) for validation."""
    H = emb_w.shape[1]
    w_bf16 = sru_w.astype(jnp.bfloat16)
    c = hidden.reshape(1, H).astype(jnp.float32)
    hs = []
    T = int(tokens.shape[0])
    for t in range(T):
        x = emb_w[tokens[t]].reshape(1, H).astype(jnp.float32)
        u = jnp.dot(x.astype(jnp.bfloat16), w_bf16, preferred_element_type=jnp.float32)
        x_tilde = u[:, 0:H]
        f = jax.nn.sigmoid(u[:, H:2 * H] + sru_b[:, 0:H])
        r = jax.nn.sigmoid(u[:, 2 * H:3 * H] + sru_b[:, H:2 * H])
        c = f * c + (1.0 - f) * x_tilde
        h = r * jnp.tanh(c) + (1.0 - r) * x
        hs.append(h)
    return jnp.stack(hs, axis=0), c.reshape(1, 1, H)


if __name__ == "__main__":
    INPUT_SIZE = 64      # vocab size
    HIDDEN_SIZE = 128    # hidden size
    SEQ_LEN = 12         # decode-loop length (pads to one 16-step time tile)

    key = jax.random.PRNGKey(0)
    k_emb, k_w, k_b, k_h, k_tok = jax.random.split(key, 5)

    emb_w = jax.random.normal(k_emb, (INPUT_SIZE, HIDDEN_SIZE), jnp.float32) * 0.1
    sru_w = jax.random.normal(k_w, (HIDDEN_SIZE, 3 * HIDDEN_SIZE), jnp.float32) * 0.1
    sru_b = jax.random.normal(k_b, (1, 2 * HIDDEN_SIZE), jnp.float32) * 0.1
    hidden = jax.random.normal(k_h, (1, 1, HIDDEN_SIZE), jnp.float32) * 0.1
    cell = jnp.zeros((1, 1, HIDDEN_SIZE), jnp.float32)   # initCell(); unused by forward
    tokens = jax.random.randint(k_tok, (SEQ_LEN,), 0, INPUT_SIZE, dtype=jnp.int32)

    # Fused-sequence path (the real workload: one pallas_call for the whole decode loop).
    h_seq, hid = encoder_rnn_sru_sequence(tokens, hidden, cell, emb_w, sru_w, sru_b)
    h_seq = jax.block_until_ready(h_seq)
    hid = jax.block_until_ready(hid)

    ref_h, ref_hid = reference_sequence(tokens, hidden, emb_w, sru_w, sru_b)
    assert h_seq.shape == (SEQ_LEN, 1, HIDDEN_SIZE) and hid.shape == (1, 1, HIDDEN_SIZE)
    assert jnp.allclose(h_seq, ref_h, atol=1e-4, rtol=1e-4)
    assert jnp.allclose(hid, ref_hid, atol=1e-4, rtol=1e-4)

    # Single-token path (exact original-module forward semantics).
    out1, hid1 = encoder_rnn_sru_forward(tokens[0], hidden, cell, emb_w, sru_w, sru_b)
    out1 = jax.block_until_ready(out1)
    hid1 = jax.block_until_ready(hid1)
    ref1_h, ref1_hid = reference_sequence(tokens[:1], hidden, emb_w, sru_w, sru_b)
    assert out1.shape == (1, 1, HIDDEN_SIZE) and hid1.shape == (1, 1, HIDDEN_SIZE)
    assert jnp.allclose(out1, ref1_h.reshape(1, 1, HIDDEN_SIZE), atol=1e-4, rtol=1e-4)
    assert jnp.allclose(hid1, ref1_hid, atol=1e-4, rtol=1e-4)

    print("KERNEL_OK")
</pallas_src>

<mosaic_0001>
module attributes {stable_mosaic.version = 11 : i64} {
  func.func @_sru_seq_kernel(%arg0: i32, %arg1: memref<16xi32, #tpu.memory_space<smem>>, %arg2: memref<64x128xf32, #tpu.memory_space<vmem>>, %arg3: memref<128x384xbf16, #tpu.memory_space<vmem>>, %arg4: memref<1x256xf32, #tpu.memory_space<vmem>>, %arg5: memref<1x128xf32, #tpu.memory_space<vmem>>, %arg6: memref<16x128xf32, #tpu.memory_space<vmem>>, %arg7: memref<1x128xf32, #tpu.memory_space<vmem>>, %arg8: memref<16x128xf32, #tpu.memory_space<vmem>>, %arg9: memref<16x128xf32, #tpu.memory_space<vmem>>) attributes {dimension_semantics = [#tpu.dimension_semantics<arbitrary>], iteration_bounds = array<i64: 1>, scalar_prefetch = 1 : i64, scratch_operands = 2 : i64, tpu.core_type = #tpu.core_type<tc>, window_params = [{pipeline_mode = #tpu.pipeline_mode<synchronous>, transform_indices = @transform_0, window_bounds = array<i64: 64, 128>}, {pipeline_mode = #tpu.pipeline_mode<synchronous>, transform_indices = @transform_1, window_bounds = array<i64: 128, 384>}, {pipeline_mode = #tpu.pipeline_mode<synchronous>, transform_indices = @transform_2, window_bounds = array<i64: 1, 256>}, {pipeline_mode = #tpu.pipeline_mode<synchronous>, transform_indices = @transform_3, window_bounds = array<i64: 1, 128>}, {transform_indices = @transform_4, window_bounds = array<i64: 16, 128>}, {pipeline_mode = #tpu.pipeline_mode<synchronous>, transform_indices = @transform_5, window_bounds = array<i64: 1, 128>}]} {
    %c16_i32 = arith.constant 16 : i32
    %0 = arith.muli %arg0, %c16_i32 : i32
    %c0_i32 = arith.constant 0 : i32
    %1 = arith.cmpi eq, %arg0, %c0_i32 : i32
    %2 = arith.extui %1 : i1 to i32
    %c0_i32_0 = arith.constant 0 : i32
    %3 = arith.cmpi ne, %2, %c0_i32_0 : i32
    scf.if %3 {
      %c0_87 = arith.constant 0 : index
      %c0_88 = arith.constant 0 : index
      %223 = vector.load %arg5[%c0_87, %c0_88] : memref<1x128xf32, #tpu.memory_space<vmem>>, vector<1x128xf32>
      %c0_89 = arith.constant 0 : index
      %c0_90 = arith.constant 0 : index
      %224 = vector.load %arg7[%c0_89, %c0_90] : memref<1x128xf32, #tpu.memory_space<vmem>>, vector<1x128xf32>
      tpu.vector_store %arg7[%c0_89, %c0_90], %223 {strides = array<i32>} : memref<1x128xf32, #tpu.memory_space<vmem>>, vector<1x128xf32>,
    } else {
    }
    %c0_i32_1 = arith.constant 0 : i32
    %4 = arith.addi %0, %c0_i32_1 : i32
    %5 = arith.index_cast %4 : i32 to index
    %6 = memref.load %arg1[%5] : memref<16xi32, #tpu.memory_space<smem>>
    %7 = arith.index_cast %6 : i32 to index
    %c0 = arith.constant 0 : index
    %8 = vector.load %arg2[%7, %c0] : memref<64x128xf32, #tpu.memory_space<vmem>>, vector<1x128xf32>
    %c0_2 = arith.constant 0 : index
    %c0_3 = arith.constant 0 : index
    %9 = vector.load %arg8[%c0_2, %c0_3] : memref<16x128xf32, #tpu.memory_space<vmem>>, vector<1x128xf32>
    tpu.vector_store %arg8[%c0_2, %c0_3], %8 {strides = array<i32>} : memref<16x128xf32, #tpu.memory_space<vmem>>, vector<1x128xf32>,
    %c1_i32 = arith.constant 1 : i32
    %10 = arith.addi %0, %c1_i32 : i32
    %11 = arith.index_cast %10 : i32 to index
    %12 = memref.load %arg1[%11] : memref<16xi32, #tpu.memory_space<smem>>
    %13 = arith.index_cast %12 : i32 to index
    %c0_4 = arith.constant 0 : index
    %14 = vector.load %arg2[%13, %c0_4] : memref<64x128xf32, #tpu.memory_space<vmem>>, vector<1x128xf32>
    %c1 = arith.constant 1 : index
    %c0_5 = arith.constant 0 : index
    %15 = vector.load %arg8[%c1, %c0_5] : memref<16x128xf32, #tpu.memory_space<vmem>>, vector<1x128xf32>
    tpu.vector_store %arg8[%c1, %c0_5], %14 {strides = array<i32>} : memref<16x128xf32, #tpu.memory_space<vmem>>, vector<1x128xf32>,
    %c2_i32 = arith.constant 2 : i32
    %16 = arith.addi %0, %c2_i32 : i32
    %17 = arith.index_cast %16 : i32 to index
    %18 = memref.load %arg1[%17] : memref<16xi32, #tpu.memory_space<smem>>
    %19 = arith.index_cast %18 : i32 to index
    %c0_6 = arith.constant 0 : index
    %20 = vector.load %arg2[%19, %c0_6] : memref<64x128xf32, #tpu.memory_space<vmem>>, vector<1x128xf32>
    %c2 = arith.constant 2 : index
    %c0_7 = arith.constant 0 : index
    %21 = vector.load %arg8[%c2, %c0_7] : memref<16x128xf32, #tpu.memory_space<vmem>>, vector<1x128xf32>
    tpu.vector_store %arg8[%c2, %c0_7], %20 {strides = array<i32>} : memref<16x128xf32, #tpu.memory_space<vmem>>, vector<1x128xf32>,
    %c3_i32 = arith.constant 3 : i32
    %22 = arith.addi %0, %c3_i32 : i32
    %23 = arith.index_cast %22 : i32 to index
    %24 = memref.load %arg1[%23] : memref<16xi32, #tpu.memory_space<smem>>
    %25 = arith.index_cast %24 : i32 to index
    %c0_8 = arith.constant 0 : index
    %26 = vector.load %arg2[%25, %c0_8] : memref<64x128xf32, #tpu.memory_space<vmem>>, vector<1x128xf32>
    %c3 = arith.constant 3 : index
    %c0_9 = arith.constant 0 : index
    %27 = vector.load %arg8[%c3, %c0_9] : memref<16x128xf32, #tpu.memory_space<vmem>>, vector<1x128xf32>
    tpu.vector_store %arg8[%c3, %c0_9], %26 {strides = array<i32>} : memref<16x128xf32, #tpu.memory_space<vmem>>, vector<1x128xf32>,
    %c4_i32 = arith.constant 4 : i32
    %28 = arith.addi %0, %c4_i32 : i32
    %29 = arith.index_cast %28 : i32 to index
    %30 = memref.load %arg1[%29] : memref<16xi32, #tpu.memory_space<smem>>
    %31 = arith.index_cast %30 : i32 to index
    %c0_10 = arith.constant 0 : index
    %32 = vector.load %arg2[%31, %c0_10] : memref<64x128xf32, #tpu.memory_space<vmem>>, vector<1x128xf32>
    %c4 = arith.constant 4 : index
    %c0_11 = arith.constant 0 : index
    %33 = vector.load %arg8[%c4, %c0_11] : memref<16x128xf32, #tpu.memory_space<vmem>>, vector<1x128xf32>
    tpu.vector_store %arg8[%c4, %c0_11], %32 {strides = array<i32>} : memref<16x128xf32, #tpu.memory_space<vmem>>, vector<1x128xf32>,
    %c5_i32 = arith.constant 5 : i32
    %34 = arith.addi %0, %c5_i32 : i32
    %35 = arith.index_cast %34 : i32 to index
    %36 = memref.load %arg1[%35] : memref<16xi32, #tpu.memory_space<smem>>
    %37 = arith.index_cast %36 : i32 to index
    %c0_12 = arith.constant 0 : index
    %38 = vector.load %arg2[%37, %c0_12] : memref<64x128xf32, #tpu.memory_space<vmem>>, vector<1x128xf32>
    %c5 = arith.constant 5 : index
    %c0_13 = arith.constant 0 : index
    %39 = vector.load %arg8[%c5, %c0_13] : memref<16x128xf32, #tpu.memory_space<vmem>>, vector<1x128xf32>
    tpu.vector_store %arg8[%c5, %c0_13], %38 {strides = array<i32>} : memref<16x128xf32, #tpu.memory_space<vmem>>, vector<1x128xf32>,
    %c6_i32 = arith.constant 6 : i32
    %40 = arith.addi %0, %c6_i32 : i32
    %41 = arith.index_cast %40 : i32 to index
    %42 = memref.load %arg1[%41] : memref<16xi32, #tpu.memory_space<smem>>
    %43 = arith.index_cast %42 : i32 to index
    %c0_14 = arith.constant 0 : index
    %44 = vector.load %arg2[%43, %c0_14] : memref<64x128xf32, #tpu.memory_space<vmem>>, vector<1x128xf32>
    %c6 = arith.constant 6 : index
    %c0_15 = arith.constant 0 : index
    %45 = vector.load %arg8[%c6, %c0_15] : memref<16x128xf32, #tpu.memory_space<vmem>>, vector<1x128xf32>
    tpu.vector_store %arg8[%c6, %c0_15], %44 {strides = array<i32>} : memref<16x128xf32, #tpu.memory_space<vmem>>, vector<1x128xf32>,
    %c7_i32 = arith.constant 7 : i32
    %46 = arith.addi %0, %c7_i32 : i32
    %47 = arith.index_cast %46 : i32 to index
    %48 = memref.load %arg1[%47] : memref<16xi32, #tpu.memory_space<smem>>
    %49 = arith.index_cast %48 : i32 to index
    %c0_16 = arith.constant 0 : index
    %50 = vector.load %arg2[%49, %c0_16] : memref<64x128xf32, #tpu.memory_space<vmem>>, vector<1x128xf32>
    %c7 = arith.constant 7 : index
    %c0_17 = arith.constant 0 : index
    %51 = vector.load %arg8[%c7, %c0_17] : memref<16x128xf32, #tpu.memory_space<vmem>>, vector<1x128xf32>
    tpu.vector_store %arg8[%c7, %c0_17], %50 {strides = array<i32>} : memref<16x128xf32, #tpu.memory_space<vmem>>, vector<1x128xf32>,
    %c8_i32 = arith.constant 8 : i32
    %52 = arith.addi %0, %c8_i32 : i32
    %53 = arith.index_cast %52 : i32 to index
    %54 = memref.load %arg1[%53] : memref<16xi32, #tpu.memory_space<smem>>
    %55 = arith.index_cast %54 : i32 to index
    %c0_18 = arith.constant 0 : index
    %56 = vector.load %arg2[%55, %c0_18] : memref<64x128xf32, #tpu.memory_space<vmem>>, vector<1x128xf32>
    %c8 = arith.constant 8 : index
    %c0_19 = arith.constant 0 : index
    %57 = vector.load %arg8[%c8, %c0_19] : memref<16x128xf32, #tpu.memory_space<vmem>>, vector<1x128xf32>
    tpu.vector_store %arg8[%c8, %c0_19], %56 {strides = array<i32>} : memref<16x128xf32, #tpu.memory_space<vmem>>, vector<1x128xf32>,
    %c9_i32 = arith.constant 9 : i32
    %58 = arith.addi %0, %c9_i32 : i32
    %59 = arith.index_cast %58 : i32 to index
    %60 = memref.load %arg1[%59] : memref<16xi32, #tpu.memory_space<smem>>
    %61 = arith.index_cast %60 : i32 to index
    %c0_20 = arith.constant 0 : index
    %62 = vector.load %arg2[%61, %c0_20] : memref<64x128xf32, #tpu.memory_space<vmem>>, vector<1x128xf32>
    %c9 = arith.constant 9 : index
    %c0_21 = arith.constant 0 : index
    %63 = vector.load %arg8[%c9, %c0_21] : memref<16x128xf32, #tpu.memory_space<vmem>>, vector<1x128xf32>
    tpu.vector_store %arg8[%c9, %c0_21], %62 {strides = array<i32>} : memref<16x128xf32, #tpu.memory_space<vmem>>, vector<1x128xf32>,
    %c10_i32 = arith.constant 10 : i32
    %64 = arith.addi %0, %c10_i32 : i32
    %65 = arith.index_cast %64 : i32 to index
    %66 = memref.load %arg1[%65] : memref<16xi32, #tpu.memory_space<smem>>
    %67 = arith.index_cast %66 : i32 to index
    %c0_22 = arith.constant 0 : index
    %68 = vector.load %arg2[%67, %c0_22] : memref<64x128xf32, #tpu.memory_space<vmem>>, vector<1x128xf32>
    %c10 = arith.constant 10 : index
    %c0_23 = arith.constant 0 : index
    %69 = vector.load %arg8[%c10, %c0_23] : memref<16x128xf32, #tpu.memory_space<vmem>>, vector<1x128xf32>
    tpu.vector_store %arg8[%c10, %c0_23], %68 {strides = array<i32>} : memref<16x128xf32, #tpu.memory_space<vmem>>, vector<1x128xf32>,
    %c11_i32 = arith.constant 11 : i32
    %70 = arith.addi %0, %c11_i32 : i32
    %71 = arith.index_cast %70 : i32 to index
    %72 = memref.load %arg1[%71] : memref<16xi32, #tpu.memory_space<smem>>
    %73 = arith.index_cast %72 : i32 to index
    %c0_24 = arith.constant 0 : index
    %74 = vector.load %arg2[%73, %c0_24] : memref<64x128xf32, #tpu.memory_space<vmem>>, vector<1x128xf32>
    %c11 = arith.constant 11 : index
    %c0_25 = arith.constant 0 : index
    %75 = vector.load %arg8[%c11, %c0_25] : memref<16x128xf32, #tpu.memory_space<vmem>>, vector<1x128xf32>
    tpu.vector_store %arg8[%c11, %c0_25], %74 {strides = array<i32>} : memref<16x128xf32, #tpu.memory_space<vmem>>, vector<1x128xf32>,
    %c12_i32 = arith.constant 12 : i32
    %76 = arith.addi %0, %c12_i32 : i32
    %77 = arith.index_cast %76 : i32 to index
    %78 = memref.load %arg1[%77] : memref<16xi32, #tpu.memory_space<smem>>
    %79 = arith.index_cast %78 : i32 to index
    %c0_26 = arith.constant 0 : index
    %80 = vector.load %arg2[%79, %c0_26] : memref<64x128xf32, #tpu.memory_space<vmem>>, vector<1x128xf32>
    %c12 = arith.constant 12 : index
    %c0_27 = arith.constant 0 : index
    %81 = vector.load %arg8[%c12, %c0_27] : memref<16x128xf32, #tpu.memory_space<vmem>>, vector<1x128xf32>
    tpu.vector_store %arg8[%c12, %c0_27], %80 {strides = array<i32>} : memref<16x128xf32, #tpu.memory_space<vmem>>, vector<1x128xf32>,
    %c13_i32 = arith.constant 13 : i32
    %82 = arith.addi %0, %c13_i32 : i32
    %83 = arith.index_cast %82 : i32 to index
    %84 = memref.load %arg1[%83] : memref<16xi32, #tpu.memory_space<smem>>
    %85 = arith.index_cast %84 : i32 to index
    %c0_28 = arith.constant 0 : index
    %86 = vector.load %arg2[%85, %c0_28] : memref<64x128xf32, #tpu.memory_space<vmem>>, vector<1x128xf32>
    %c13 = arith.constant 13 : index
    %c0_29 = arith.constant 0 : index
    %87 = vector.load %arg8[%c13, %c0_29] : memref<16x128xf32, #tpu.memory_space<vmem>>, vector<1x128xf32>
    tpu.vector_store %arg8[%c13, %c0_29], %86 {strides = array<i32>} : memref<16x128xf32, #tpu.memory_space<vmem>>, vector<1x128xf32>,
    %c14_i32 = arith.constant 14 : i32
    %88 = arith.addi %0, %c14_i32 : i32
    %89 = arith.index_cast %88 : i32 to index
    %90 = memref.load %arg1[%89] : memref<16xi32, #tpu.memory_space<smem>>
    %91 = arith.index_cast %90 : i32 to index
    %c0_30 = arith.constant 0 : index
    %92 = vector.load %arg2[%91, %c0_30] : memref<64x128xf32, #tpu.memory_space<vmem>>, vector<1x128xf32>
    %c14 = arith.constant 14 : index
    %c0_31 = arith.constant 0 : index
    %93 = vector.load %arg8[%c14, %c0_31] : memref<16x128xf32, #tpu.memory_space<vmem>>, vector<1x128xf32>
    tpu.vector_store %arg8[%c14, %c0_31], %92 {strides = array<i32>} : memref<16x128xf32, #tpu.memory_space<vmem>>, vector<1x128xf32>,
    %c15_i32 = arith.constant 15 : i32
    %94 = arith.addi %0, %c15_i32 : i32
    %95 = arith.index_cast %94 : i32 to index
    %96 = memref.load %arg1[%95] : memref<16xi32, #tpu.memory_space<smem>>
    %97 = arith.index_cast %96 : i32 to index
    %c0_32 = arith.constant 0 : index
    %98 = vector.load %arg2[%97, %c0_32] : memref<64x128xf32, #tpu.memory_space<vmem>>, vector<1x128xf32>
    %c15 = arith.constant 15 : index
    %c0_33 = arith.constant 0 : index
    %99 = vector.load %arg8[%c15, %c0_33] : memref<16x128xf32, #tpu.memory_space<vmem>>, vector<1x128xf32>
    tpu.vector_store %arg8[%c15, %c0_33], %98 {strides = array<i32>} : memref<16x128xf32, #tpu.memory_space<vmem>>, vector<1x128xf32>,
    %c0_34 = arith.constant 0 : index
    %c0_35 = arith.constant 0 : index
    %100 = vector.load %arg8[%c0_34, %c0_35] : memref<16x128xf32, #tpu.memory_space<vmem>>, vector<16x128xf32>
    %101 = arith.truncf %100 : vector<16x128xf32> to vector<16x128xbf16>
    %c0_36 = arith.constant 0 : index
    %c0_37 = arith.constant 0 : index
    %102 = vector.load %arg3[%c0_36, %c0_37] : memref<128x384xbf16, #tpu.memory_space<vmem>>, vector<128x384xbf16>
    %cst = arith.constant dense<0.000000e+00> : vector<16x384xf32>
    %103 = tpu.matmul %101, %102, %cst {dimension_numbers = #tpu.dot_dimension_numbers<[1], [0], [0], [1], [0, 0, 1, 1], [], []>} : vector<16x128xbf16>, vector<128x384xbf16>, vector<16x384xf32> -> vector<16x384xf32>
    %104 = vector.extract_strided_slice %103 {offsets = [0, 0], sizes = [16, 128], strides = [1, 1]} : vector<16x384xf32> to vector<16x128xf32>
    %105 = vector.extract_strided_slice %103 {offsets = [0, 128], sizes = [16, 128], strides = [1, 1]} : vector<16x384xf32> to vector<16x128xf32>
    %c0_38 = arith.constant 0 : index
    %c0_39 = arith.constant 0 : index
    %106 = vector.load %arg4[%c0_38, %c0_39] : memref<1x256xf32, #tpu.memory_space<vmem>>, vector<1x128xf32>
    %107 = vector.broadcast %106 : vector<1x128xf32> to vector<16x128xf32>
    %108 = arith.addf %105, %107 : vector<16x128xf32>
    %109 = arith.negf %108 : vector<16x128xf32>
    %110 = math.exp %109 : vector<16x128xf32>
    %cst_40 = arith.constant 1.000000e+00 : f32
    %111 = vector.broadcast %cst_40 : f32 to vector<16x128xf32>
    %112 = arith.addf %111, %110 : vector<16x128xf32>
    %113 = arith.divf %111, %112 : vector<16x128xf32>
    %114 = vector.extract_strided_slice %103 {offsets = [0, 256], sizes = [16, 128], strides = [1, 1]} : vector<16x384xf32> to vector<16x128xf32>
    %c0_41 = arith.constant 0 : index
    %c128 = arith.constant 128 : index
    %115 = vector.load %arg4[%c0_41, %c128] : memref<1x256xf32, #tpu.memory_space<vmem>>, vector<1x128xf32>
    %116 = vector.broadcast %115 : vector<1x128xf32> to vector<16x128xf32>
    %117 = arith.addf %114, %116 : vector<16x128xf32>
    %118 = arith.negf %117 : vector<16x128xf32>
    %119 = math.exp %118 : vector<16x128xf32>
    %cst_42 = arith.constant 1.000000e+00 : f32
    %120 = vector.broadcast %cst_42 : f32 to vector<16x128xf32>
    %121 = arith.addf %120, %119 : vector<16x128xf32>
    %122 = arith.divf %120, %121 : vector<16x128xf32>
    %123 = tpu.iota {dimensions = array<i32: 0>} : vector<16x128xi32>
    %124 = vector.broadcast %0 : i32 to vector<16x128xi32>
    %125 = arith.addi %124, %123 : vector<16x128xi32>
    %c12_i32_43 = arith.constant 12 : i32
    %126 = vector.broadcast %c12_i32_43 : i32 to vector<16x128xi32>
    %127 = arith.cmpi slt, %125, %126 : vector<16x128xi32>
    %cst_44 = arith.constant 1.000000e+00 : f32
    %128 = vector.broadcast %cst_44 : f32 to vector<16x128xf32>
    %129 = arith.select %127, %113, %128 : vector<16x128xi1>, vector<16x128xf32>
    %cst_45 = arith.constant 1.000000e+00 : f32
    %130 = vector.broadcast %cst_45 : f32 to vector<16x128xf32>
    %131 = arith.subf %130, %129 : vector<16x128xf32>
    %132 = arith.mulf %131, %104 : vector<16x128xf32>
    %c0_46 = arith.constant 0 : index
    %c0_47 = arith.constant 0 : index
    %133 = vector.load %arg7[%c0_46, %c0_47] : memref<1x128xf32, #tpu.memory_space<vmem>>, vector<1x128xf32>
    %134 = vector.extract_strided_slice %129 {offsets = [0, 0], sizes = [1, 128], strides = [1, 1]} : vector<16x128xf32> to vector<1x128xf32>
    %135 = arith.mulf %134, %133 : vector<1x128xf32>
    %136 = vector.extract_strided_slice %132 {offsets = [0, 0], sizes = [1, 128], strides = [1, 1]} : vector<16x128xf32> to vector<1x128xf32>
    %137 = arith.addf %135, %136 : vector<1x128xf32>
    %c0_48 = arith.constant 0 : index
    %c0_49 = arith.constant 0 : index
    %138 = vector.load %arg9[%c0_48, %c0_49] : memref<16x128xf32, #tpu.memory_space<vmem>>, vector<1x128xf32>
    tpu.vector_store %arg9[%c0_48, %c0_49], %137 {strides = array<i32>} : memref<16x128xf32, #tpu.memory_space<vmem>>, vector<1x128xf32>,
    %139 = vector.extract_strided_slice %129 {offsets = [1, 0], sizes = [1, 128], strides = [1, 1]} : vector<16x128xf32> to vector<1x128xf32>
    %140 = arith.mulf %139, %137 : vector<1x128xf32>
    %141 = vector.extract_strided_slice %132 {offsets = [1, 0], sizes = [1, 128], strides = [1, 1]} : vector<16x128xf32> to vector<1x128xf32>
    %142 = arith.addf %140, %141 : vector<1x128xf32>
    %c1_50 = arith.constant 1 : index
    %c0_51 = arith.constant 0 : index
    %143 = vector.load %arg9[%c1_50, %c0_51] : memref<16x128xf32, #tpu.memory_space<vmem>>, vector<1x128xf32>
    tpu.vector_store %arg9[%c1_50, %c0_51], %142 {strides = array<i32>} : memref<16x128xf32, #tpu.memory_space<vmem>>, vector<1x128xf32>,
    %144 = vector.extract_strided_slice %129 {offsets = [2, 0], sizes = [1, 128], strides = [1, 1]} : vector<16x128xf32> to vector<1x128xf32>
    %145 = arith.mulf %144, %142 : vector<1x128xf32>
    %146 = vector.extract_strided_slice %132 {offsets = [2, 0], sizes = [1, 128], strides = [1, 1]} : vector<16x128xf32> to vector<1x128xf32>
    %147 = arith.addf %145, %146 : vector<1x128xf32>
    %c2_52 = arith.constant 2 : index
    %c0_53 = arith.constant 0 : index
    %148 = vector.load %arg9[%c2_52, %c0_53] : memref<16x128xf32, #tpu.memory_space<vmem>>, vector<1x128xf32>
    tpu.vector_store %arg9[%c2_52, %c0_53], %147 {strides = array<i32>} : memref<16x128xf32, #tpu.memory_space<vmem>>, vector<1x128xf32>,
    %149 = vector.extract_strided_slice %129 {offsets = [3, 0], sizes = [1, 128], strides = [1, 1]} : vector<16x128xf32> to vector<1x128xf32>
    %150 = arith.mulf %149, %147 : vector<1x128xf32>
    %151 = vector.extract_strided_slice %132 {offsets = [3, 0], sizes = [1, 128], strides = [1, 1]} : vector<16x128xf32> to vector<1x128xf32>
    %152 = arith.addf %150, %151 : vector<1x128xf32>
    %c3_54 = arith.constant 3 : index
    %c0_55 = arith.constant 0 : index
    %153 = vector.load %arg9[%c3_54, %c0_55] : memref<16x128xf32, #tpu.memory_space<vmem>>, vector<1x128xf32>
    tpu.vector_store %arg9[%c3_54, %c0_55], %152 {strides = array<i32>} : memref<16x128xf32, #tpu.memory_space<vmem>>, vector<1x128xf32>,
    %154 = vector.extract_strided_slice %129 {offsets = [4, 0], sizes = [1, 128], strides = [1, 1]} : vector<16x128xf32> to vector<1x128xf32>
    %155 = arith.mulf %154, %152 : vector<1x128xf32>
    %156 = vector.extract_strided_slice %132 {offsets = [4, 0], sizes = [1, 128], strides = [1, 1]} : vector<16x128xf32> to vector<1x128xf32>
    %157 = arith.addf %155, %156 : vector<1x128xf32>
    %c4_56 = arith.constant 4 : index
    %c0_57 = arith.constant 0 : index
    %158 = vector.load %arg9[%c4_56, %c0_57] : memref<16x128xf32, #tpu.memory_space<vmem>>, vector<1x128xf32>
    tpu.vector_store %arg9[%c4_56, %c0_57], %157 {strides = array<i32>} : memref<16x128xf32, #tpu.memory_space<vmem>>, vector<1x128xf32>,
    %159 = vector.extract_strided_slice %129 {offsets = [5, 0], sizes = [1, 128], strides = [1, 1]} : vector<16x128xf32> to vector<1x128xf32>
    %160 = arith.mulf %159, %157 : vector<1x128xf32>
    %161 = vector.extract_strided_slice %132 {offsets = [5, 0], sizes = [1, 128], strides = [1, 1]} : vector<16x128xf32> to vector<1x128xf32>
    %162 = arith.addf %160, %161 : vector<1x128xf32>
    %c5_58 = arith.constant 5 : index
    %c0_59 = arith.constant 0 : index
    %163 = vector.load %arg9[%c5_58, %c0_59] : memref<16x128xf32, #tpu.memory_space<vmem>>, vector<1x128xf32>
    tpu.vector_store %arg9[%c5_58, %c0_59], %162 {strides = array<i32>} : memref<16x128xf32, #tpu.memory_space<vmem>>, vector<1x128xf32>,
    %164 = vector.extract_strided_slice %129 {offsets = [6, 0], sizes = [1, 128], strides = [1, 1]} : vector<16x128xf32> to vector<1x128xf32>
    %165 = arith.mulf %164, %162 : vector<1x128xf32>
    %166 = vector.extract_strided_slice %132 {offsets = [6, 0], sizes = [1, 128], strides = [1, 1]} : vector<16x128xf32> to vector<1x128xf32>
    %167 = arith.addf %165, %166 : vector<1x128xf32>
    %c6_60 = arith.constant 6 : index
    %c0_61 = arith.constant 0 : index
    %168 = vector.load %arg9[%c6_60, %c0_61] : memref<16x128xf32, #tpu.memory_space<vmem>>, vector<1x128xf32>
    tpu.vector_store %arg9[%c6_60, %c0_61], %167 {strides = array<i32>} : memref<16x128xf32, #tpu.memory_space<vmem>>, vector<1x128xf32>,
    %169 = vector.extract_strided_slice %129 {offsets = [7, 0], sizes = [1, 128], strides = [1, 1]} : vector<16x128xf32> to vector<1x128xf32>
    %170 = arith.mulf %169, %167 : vector<1x128xf32>
    %171 = vector.extract_strided_slice %132 {offsets = [7, 0], sizes = [1, 128], strides = [1, 1]} : vector<16x128xf32> to vector<1x128xf32>
    %172 = arith.addf %170, %171 : vector<1x128xf32>
    %c7_62 = arith.constant 7 : index
    %c0_63 = arith.constant 0 : index
    %173 = vector.load %arg9[%c7_62, %c0_63] : memref<16x128xf32, #tpu.memory_space<vmem>>, vector<1x128xf32>
    tpu.vector_store %arg9[%c7_62, %c0_63], %172 {strides = array<i32>} : memref<16x128xf32, #tpu.memory_space<vmem>>, vector<1x128xf32>,
    %174 = vector.extract_strided_slice %129 {offsets = [8, 0], sizes = [1, 128], strides = [1, 1]} : vector<16x128xf32> to vector<1x128xf32>
    %175 = arith.mulf %174, %172 : vector<1x128xf32>
    %176 = vector.extract_strided_slice %132 {offsets = [8, 0], sizes = [1, 128], strides = [1, 1]} : vector<16x128xf32> to vector<1x128xf32>
    %177 = arith.addf %175, %176 : vector<1x128xf32>
    %c8_64 = arith.constant 8 : index
    %c0_65 = arith.constant 0 : index
    %178 = vector.load %arg9[%c8_64, %c0_65] : memref<16x128xf32, #tpu.memory_space<vmem>>, vector<1x128xf32>
    tpu.vector_store %arg9[%c8_64, %c0_65], %177 {strides = array<i32>} : memref<16x128xf32, #tpu.memory_space<vmem>>, vector<1x128xf32>,
    %179 = vector.extract_strided_slice %129 {offsets = [9, 0], sizes = [1, 128], strides = [1, 1]} : vector<16x128xf32> to vector<1x128xf32>
    %180 = arith.mulf %179, %177 : vector<1x128xf32>
    %181 = vector.extract_strided_slice %132 {offsets = [9, 0], sizes = [1, 128], strides = [1, 1]} : vector<16x128xf32> to vector<1x128xf32>
    %182 = arith.addf %180, %181 : vector<1x128xf32>
    %c9_66 = arith.constant 9 : index
    %c0_67 = arith.constant 0 : index
    %183 = vector.load %arg9[%c9_66, %c0_67] : memref<16x128xf32, #tpu.memory_space<vmem>>, vector<1x128xf32>
    tpu.vector_store %arg9[%c9_66, %c0_67], %182 {strides = array<i32>} : memref<16x128xf32, #tpu.memory_space<vmem>>, vector<1x128xf32>,
    %184 = vector.extract_strided_slice %129 {offsets = [10, 0], sizes = [1, 128], strides = [1, 1]} : vector<16x128xf32> to vector<1x128xf32>
    %185 = arith.mulf %184, %182 : vector<1x128xf32>
    %186 = vector.extract_strided_slice %132 {offsets = [10, 0], sizes = [1, 128], strides = [1, 1]} : vector<16x128xf32> to vector<1x128xf32>
    %187 = arith.addf %185, %186 : vector<1x128xf32>
    %c10_68 = arith.constant 10 : index
    %c0_69 = arith.constant 0 : index
    %188 = vector.load %arg9[%c10_68, %c0_69] : memref<16x128xf32, #tpu.memory_space<vmem>>, vector<1x128xf32>
    tpu.vector_store %arg9[%c10_68, %c0_69], %187 {strides = array<i32>} : memref<16x128xf32, #tpu.memory_space<vmem>>, vector<1x128xf32>,
    %189 = vector.extract_strided_slice %129 {offsets = [11, 0], sizes = [1, 128], strides = [1, 1]} : vector<16x128xf32> to vector<1x128xf32>
    %190 = arith.mulf %189, %187 : vector<1x128xf32>
    %191 = vector.extract_strided_slice %132 {offsets = [11, 0], sizes = [1, 128], strides = [1, 1]} : vector<16x128xf32> to vector<1x128xf32>
    %192 = arith.addf %190, %191 : vector<1x128xf32>
    %c11_70 = arith.constant 11 : index
    %c0_71 = arith.constant 0 : index
    %193 = vector.load %arg9[%c11_70, %c0_71] : memref<16x128xf32, #tpu.memory_space<vmem>>, vector<1x128xf32>
    tpu.vector_store %arg9[%c11_70, %c0_71], %192 {strides = array<i32>} : memref<16x128xf32, #tpu.memory_space<vmem>>, vector<1x128xf32>,
    %194 = vector.extract_strided_slice %129 {offsets = [12, 0], sizes = [1, 128], strides = [1, 1]} : vector<16x128xf32> to vector<1x128xf32>
    %195 = arith.mulf %194, %192 : vector<1x128xf32>
    %196 = vector.extract_strided_slice %132 {offsets = [12, 0], sizes = [1, 128], strides = [1, 1]} : vector<16x128xf32> to vector<1x128xf32>
    %197 = arith.addf %195, %196 : vector<1x128xf32>
    %c12_72 = arith.constant 12 : index
    %c0_73 = arith.constant 0 : index
    %198 = vector.load %arg9[%c12_72, %c0_73] : memref<16x128xf32, #tpu.memory_space<vmem>>, vector<1x128xf32>
    tpu.vector_store %arg9[%c12_72, %c0_73], %197 {strides = array<i32>} : memref<16x128xf32, #tpu.memory_space<vmem>>, vector<1x128xf32>,
    %199 = vector.extract_strided_slice %129 {offsets = [13, 0], sizes = [1, 128], strides = [1, 1]} : vector<16x128xf32> to vector<1x128xf32>
    %200 = arith.mulf %199, %197 : vector<1x128xf32>
    %201 = vector.extract_strided_slice %132 {offsets = [13, 0], sizes = [1, 128], strides = [1, 1]} : vector<16x128xf32> to vector<1x128xf32>
    %202 = arith.addf %200, %201 : vector<1x128xf32>
    %c13_74 = arith.constant 13 : index
    %c0_75 = arith.constant 0 : index
    %203 = vector.load %arg9[%c13_74, %c0_75] : memref<16x128xf32, #tpu.memory_space<vmem>>, vector<1x128xf32>
    tpu.vector_store %arg9[%c13_74, %c0_75], %202 {strides = array<i32>} : memref<16x128xf32, #tpu.memory_space<vmem>>, vector<1x128xf32>,
    %204 = vector.extract_strided_slice %129 {offsets = [14, 0], sizes = [1, 128], strides = [1, 1]} : vector<16x128xf32> to vector<1x128xf32>
    %205 = arith.mulf %204, %202 : vector<1x128xf32>
    %206 = vector.extract_strided_slice %132 {offsets = [14, 0], sizes = [1, 128], strides = [1, 1]} : vector<16x128xf32> to vector<1x128xf32>
    %207 = arith.addf %205, %206 : vector<1x128xf32>
    %c14_76 = arith.constant 14 : index
    %c0_77 = arith.constant 0 : index
    %208 = vector.load %arg9[%c14_76, %c0_77] : memref<16x128xf32, #tpu.memory_space<vmem>>, vector<1x128xf32>
    tpu.vector_store %arg9[%c14_76, %c0_77], %207 {strides = array<i32>} : memref<16x128xf32, #tpu.memory_space<vmem>>, vector<1x128xf32>,
    %209 = vector.extract_strided_slice %129 {offsets = [15, 0], sizes = [1, 128], strides = [1, 1]} : vector<16x128xf32> to vector<1x128xf32>
    %210 = arith.mulf %209, %207 : vector<1x128xf32>
    %211 = vector.extract_strided_slice %132 {offsets = [15, 0], sizes = [1, 128], strides = [1, 1]} : vector<16x128xf32> to vector<1x128xf32>
    %212 = arith.addf %210, %211 : vector<1x128xf32>
    %c15_78 = arith.constant 15 : index
    %c0_79 = arith.constant 0 : index
    %213 = vector.load %arg9[%c15_78, %c0_79] : memref<16x128xf32, #tpu.memory_space<vmem>>, vector<1x128xf32>
    tpu.vector_store %arg9[%c15_78, %c0_79], %212 {strides = array<i32>} : memref<16x128xf32, #tpu.memory_space<vmem>>, vector<1x128xf32>,
    %c0_80 = arith.constant 0 : index
    %c0_81 = arith.constant 0 : index
    %214 = vector.load %arg7[%c0_80, %c0_81] : memref<1x128xf32, #tpu.memory_space<vmem>>, vector<1x128xf32>
    tpu.vector_store %arg7[%c0_80, %c0_81], %212 {strides = array<i32>} : memref<1x128xf32, #tpu.memory_space<vmem>>, vector<1x128xf32>,
    %c0_82 = arith.constant 0 : index
    %c0_83 = arith.constant 0 : index
    %215 = vector.load %arg9[%c0_82, %c0_83] : memref<16x128xf32, #tpu.memory_space<vmem>>, vector<16x128xf32>
    %216 = math.tanh %215 : vector<16x128xf32>
    %217 = arith.mulf %122, %216 : vector<16x128xf32>
    %cst_84 = arith.constant 1.000000e+00 : f32
    %218 = vector.broadcast %cst_84 : f32 to vector<16x128xf32>
    %219 = arith.subf %218, %122 : vector<16x128xf32>
    %220 = arith.mulf %219, %100 : vector<16x128xf32>
    %221 = arith.addf %217, %220 : vector<16x128xf32>
    %c0_85 = arith.constant 0 : index
    %c0_86 = arith.constant 0 : index
    %222 = vector.load %arg6[%c0_85, %c0_86] : memref<16x128xf32, #tpu.memory_space<vmem>>, vector<16x128xf32>
    tpu.vector_store %arg6[%c0_85, %c0_86], %221 {strides = array<i32>} : memref<16x128xf32, #tpu.memory_space<vmem>>, vector<16x128xf32>,
    return
  }
  func.func @transform_0(%arg0: i32, %arg1: memref<16xi32, #tpu.memory_space<smem>>) -> (i32, i32) {
    %c0_i32 = arith.constant 0 : i32
    %c0_i32_0 = arith.constant 0 : i32
    %c0_i32_1 = arith.constant 0 : i32
    return %c0_i32, %c0_i32_0 : i32, i32
  }
  func.func @transform_1(%arg0: i32, %arg1: memref<16xi32, #tpu.memory_space<smem>>) -> (i32, i32) {
    %c0_i32 = arith.constant 0 : i32
    %c0_i32_0 = arith.constant 0 : i32
    %c0_i32_1 = arith.constant 0 : i32
    return %c0_i32, %c0_i32_0 : i32, i32
  }
  func.func @transform_2(%arg0: i32, %arg1: memref<16xi32, #tpu.memory_space<smem>>) -> (i32, i32) {
    %c0_i32 = arith.constant 0 : i32
    %c0_i32_0 = arith.constant 0 : i32
    %c0_i32_1 = arith.constant 0 : i32
    return %c0_i32, %c0_i32_0 : i32, i32
  }
  func.func @transform_3(%arg0: i32, %arg1: memref<16xi32, #tpu.memory_space<smem>>) -> (i32, i32) {
    %c0_i32 = arith.constant 0 : i32
    %c0_i32_0 = arith.constant 0 : i32
    %c0_i32_1 = arith.constant 0 : i32
    return %c0_i32, %c0_i32_0 : i32, i32
  }
  func.func @transform_4(%arg0: i32, %arg1: memref<16xi32, #tpu.memory_space<smem>>) -> (i32, i32) {
    %c0_i32 = arith.constant 0 : i32
    %c0_i32_0 = arith.constant 0 : i32
    return %arg0, %c0_i32 : i32, i32
  }
  func.func @transform_5(%arg0: i32, %arg1: memref<16xi32, #tpu.memory_space<smem>>) -> (i32, i32) {
    %c0_i32 = arith.constant 0 : i32
    %c0_i32_0 = arith.constant 0 : i32
    %c0_i32_1 = arith.constant 0 : i32
    return %c0_i32, %c0_i32_0 : i32, i32
  }
}

</mosaic_0001>

<llo_original>
// kernel: tpu_custom_call.1
$region0: #{tpu_custom_call.1}
  #allocation0 [shape = 'u32[]', space=smem, size = 0x4, offset = 0x4, fixed_abs, tag = 'smem constant byte address 0x4 - core index']
  #allocation1 [shape = 'u32[144,128]{1,0:T(1,128)}', space=vmem, size = 0x12000, scoped, tag = 'internal scratch']
  #allocation2 [shape = 'f32[16,128]{1,0:T(8,128)}', space=vmem, size = 0x2000, scoped, tag = 'scratch operand']
  #allocation3 [shape = 'f32[16,128]{1,0:T(8,128)}', space=vmem, size = 0x2000, scoped, tag = 'scratch operand']
  #allocation4 [shape = 's32[1]{0}', space=sflag, size = 0x4, scoped, tag = 'scoped memory for tpu_custom_call.1']
  #allocation5 [shape = 'u8[512]{0}', space=smem, size = 0x200, scoped, tag = 'prefetched SMEM operand 0']
  %s0 = inlined_call_operand.hbm [shape: s32[16], index: 0, kind: input, shape index: {}]
  %s1 = inlined_call_operand.hbm [shape: f32[64,128], index: 1, kind: input, shape index: {}]
  %s2 = inlined_call_operand.hbm [shape: bf16[128,384], index: 2, kind: input, shape index: {}]
  %s3 = inlined_call_operand.vmem [shape: f32[1,256], index: 3, kind: input, shape index: {}]
  %s4 = inlined_call_operand.vmem [shape: f32[1,128], index: 4, kind: input, shape index: {}]
  %s5 = inlined_call_operand.hbm [shape: f32[16,128], index: 5, kind: output, shape index: {0}]
  %s6 = inlined_call_operand.hbm [shape: f32[1,128], index: 6, kind: output, shape index: {1}]
  %7 = xla_tuple %s5, %s6
  %s8 = sld [smem:[#allocation0]]
  $region46: #{tpu_custom_call.1} parent=0
    _
  %s10 = ssub.s32 1, %s8
  %s11 = scalar_select 0, %s10, %s8
  %13 = dma.hbm_to_smem %s0, 16, [#allocation5], [#allocation4]
  %14 = dma.done [#allocation4], 16
  %15 = sfence
  $region1: #{tpu_custom_call.1} parent=0
    #allocation6 [shape = 'u8[32768]{0}', space=vmem, size = 0x8000, scoped, tag = 'input window, operand 1, single buffered']
    #allocation7 [shape = 's32[1]{0}', space=sflag, size = 0x4, scoped, tag = 'scoped memory for tpu_custom_call.1']
    #allocation8 [shape = 's32[1]{0}', space=sflag, size = 0x4, scoped, tag = 'scoped memory for tpu_custom_call.1']
    #allocation9 [shape = 'u8[98304]{0}', space=vmem, size = 0x18000, scoped, tag = 'input window, operand 2, single buffered']
    #allocation10 [shape = 's32[1]{0}', space=sflag, size = 0x4, scoped, tag = 'scoped memory for tpu_custom_call.1']
    #allocation11 [shape = 'u8[8192]{0}', space=vmem, size = 0x2000, scoped, tag = 'output window, operand 0, single buffered']
    #allocation12 [shape = 'u8[512]{0}', space=vmem, size = 0x400, scoped, tag = 'output window, operand 1, single buffered']
    #allocation13 [shape = 's32[1]{0}', space=sflag, size = 0x4, scoped, tag = 'scoped memory for tpu_custom_call.1']
    %16 = vsyncpa [#allocation7], 0
    %17 = vsyncpa [#allocation10], 0
    %18 = vsyncpa [#allocation8], 0
    %19 = vsyncpa [#allocation13], 0
    // Predicated region
    $region2: #{tpu_custom_call.1} parent=1 // pred_check
      _
    $region3: #{tpu_custom_call.1} parent=1 // pred_check_branch
      %21 = sbr.rel (0) target = $region5
    $region4: #{tpu_custom_call.1} parent=1 // pred_region
      %s23 = ssub.s32 1024, 1024
      %24 = vsyncadd [#allocation7], %s23
      %s25 = sshll.u32 [#allocation6], 4
      %s26 = int_to_ptr.vmem [resolvable:$true] %s25
      %31 = dma.hbm_to_vmem [thread:$0]  %s1, 1024, %s26, [#allocation7], 128, 128, 8
    $region5: #{tpu_custom_call.1} parent=1 // pred_fallthru
      _
    // Predicated region
    $region6: #{tpu_custom_call.1} parent=1 // pred_check
      _
    $region7: #{tpu_custom_call.1} parent=1 // pred_check_branch
      %33 = sbr.rel (0) target = $region9
    $region8: #{tpu_custom_call.1} parent=1 // pred_region
      %s35 = ssub.s32 3072, 3072
      %36 = vsyncadd [#allocation10], %s35
      %s37 = sshll.u32 [#allocation9], 4
      %s38 = int_to_ptr.vmem [resolvable:$true] %s37
      %43 = dma.hbm_to_vmem [thread:$0]  %s2, 3072, %s38, [#allocation10], 192, 192, 12
    $region9: #{tpu_custom_call.1} parent=1 // pred_fallthru
      _
    // Predicated region
    $region10: #{tpu_custom_call.1} parent=1 // pred_check
      _
    $region11: #{tpu_custom_call.1} parent=1 // pred_check_branch
      %45 = sbr.rel (0) target = $region13
    $region12: #{tpu_custom_call.1} parent=1 // pred_region
      _
    $region13: #{tpu_custom_call.1} parent=1 // pred_fallthru
      _
    // Predicated region
    $region14: #{tpu_custom_call.1} parent=1 // pred_check
      _
    $region15: #{tpu_custom_call.1} parent=1 // pred_check_branch
      %47 = sbr.rel (0) target = $region17
    $region16: #{tpu_custom_call.1} parent=1 // pred_region
      _
    $region17: #{tpu_custom_call.1} parent=1 // pred_fallthru
      _
    // Predicated region
    $region18: #{tpu_custom_call.1} parent=1 // pred_check
      _
    $region19: #{tpu_custom_call.1} parent=1 // pred_check_branch
      %49 = sbr.rel (0) target = $region21
    $region20: #{tpu_custom_call.1} parent=1 // pred_region
      %50 = dma.done [#allocation7], 1024
    $region21: #{tpu_custom_call.1} parent=1 // pred_fallthru
      _
    // Predicated region
    $region22: #{tpu_custom_call.1} parent=1 // pred_check
      _
    $region23: #{tpu_custom_call.1} parent=1 // pred_check_branch
      %52 = sbr.rel (0) target = $region25
    $region24: #{tpu_custom_call.1} parent=1 // pred_region
      %53 = dma.done [#allocation10], 3072
    $region25: #{tpu_custom_call.1} parent=1 // pred_fallthru
      _
    %s55 = smul.u32 0, 16
    %p56 = scmp.eq.s32.totalorder 0, 0
    // Predicated region
    $region26: #{tpu_custom_call.1} parent=1 // pred_check
      %p57 = pneg %p56
    $region27: #{tpu_custom_call.1} parent=1 // pred_check_branch
      %59 = sbr.rel (%p57) target = $region29
    $region28: #{tpu_custom_call.1} parent=1 // pred_region
      %v60 = vld [vmem:[%s4] sm:$0x1]
      %61 = vst [vmem:[#allocation12] sm:$0x1] %v60
    $region29: #{tpu_custom_call.1} parent=1 // pred_fallthru
      _
    %s62 = sld [smem:[#allocation5 + %s55]]
    %s63 = scalar_lea.vmem [#allocation6], %s62
    %v64 = vld [vmem:[%s63] sm:$0x1]
    %65 = vst [vmem:[#allocation2] sm:$0x1] %v64
    %s66 = sadd.s32 %s55, 1
    %s67 = sld [smem:[#allocation5 + %s66]]
    %s68 = scalar_lea.vmem [#allocation6], %s67
    %v69 = vld [vmem:[%s68] sm:$0x1]
    %70 = vst [vmem:[#allocation2 + $0x1] sm:$0x1] %v69
    %s71 = sadd.s32 %s55, 2
    %s72 = sld [smem:[#allocation5 + %s71]]
    %s73 = scalar_lea.vmem [#allocation6], %s72
    %v74 = vld [vmem:[%s73] sm:$0x1]
    %75 = vst [vmem:[#allocation2 + $0x2] sm:$0x1] %v74
    %s76 = sadd.s32 %s55, 3
    %s77 = sld [smem:[#allocation5 + %s76]]
    %s78 = scalar_lea.vmem [#allocation6], %s77
    %v79 = vld [vmem:[%s78] sm:$0x1]
    %80 = vst [vmem:[#allocation2 + $0x3] sm:$0x1] %v79
    %s81 = sadd.s32 %s55, 4
    %s82 = sld [smem:[#allocation5 + %s81]]
    %s83 = scalar_lea.vmem [#allocation6], %s82
    %v84 = vld [vmem:[%s83] sm:$0x1]
    %85 = vst [vmem:[#allocation2 + $0x4] sm:$0x1] %v84
    %s86 = sadd.s32 %s55, 5
    %s87 = sld [smem:[#allocation5 + %s86]]
    %s88 = scalar_lea.vmem [#allocation6], %s87
    %v89 = vld [vmem:[%s88] sm:$0x1]
    %90 = vst [vmem:[#allocation2 + $0x5] sm:$0x1] %v89
    %s91 = sadd.s32 %s55, 6
    %s92 = sld [smem:[#allocation5 + %s91]]
    %s93 = scalar_lea.vmem [#allocation6], %s92
    %v94 = vld [vmem:[%s93] sm:$0x1]
    %95 = vst [vmem:[#allocation2 + $0x6] sm:$0x1] %v94
    %s96 = sadd.s32 %s55, 7
    %s97 = sld [smem:[#allocation5 + %s96]]
    %s98 = scalar_lea.vmem [#allocation6], %s97
    %v99 = vld [vmem:[%s98] sm:$0x1]
    %100 = vst [vmem:[#allocation2 + $0x7] sm:$0x1] %v99
    %s101 = sadd.s32 %s55, 8
    %s102 = sld [smem:[#allocation5 + %s101]]
    %s103 = scalar_lea.vmem [#allocation6], %s102
    %v104 = vld [vmem:[%s103] sm:$0x1]
    %105 = vst [vmem:[#allocation2 + $0x8] sm:$0x1] %v104
    %s106 = sadd.s32 %s55, 9
    %s107 = sld [smem:[#allocation5 + %s106]]
    %s108 = scalar_lea.vmem [#allocation6], %s107
    %v109 = vld [vmem:[%s108] sm:$0x1]
    %110 = vst [vmem:[#allocation2 + $0x9] sm:$0x1] %v109
    %s111 = sadd.s32 %s55, 10
    %s112 = sld [smem:[#allocation5 + %s111]]
    %s113 = scalar_lea.vmem [#allocation6], %s112
    %v114 = vld [vmem:[%s113] sm:$0x1]
    %115 = vst [vmem:[#allocation2 + $0xa] sm:$0x1] %v114
    %s116 = sadd.s32 %s55, 11
    %s117 = sld [smem:[#allocation5 + %s116]]
    %s118 = scalar_lea.vmem [#allocation6], %s117
    %v119 = vld [vmem:[%s118] sm:$0x1]
    %120 = vst [vmem:[#allocation2 + $0xb] sm:$0x1] %v119
    %s121 = sadd.s32 %s55, 12
    %s122 = sld [smem:[#allocation5 + %s121]]
    %s123 = scalar_lea.vmem [#allocation6], %s122
    %v124 = vld [vmem:[%s123] sm:$0x1]
    %125 = vst [vmem:[#allocation2 + $0xc] sm:$0x1] %v124
    %s126 = sadd.s32 %s55, 13
    %s127 = sld [smem:[#allocation5 + %s126]]
    %s128 = scalar_lea.vmem [#allocation6], %s127
    %v129 = vld [vmem:[%s128] sm:$0x1]
    %130 = vst [vmem:[#allocation2 + $0xd] sm:$0x1] %v129
    %s131 = sadd.s32 %s55, 14
    %s132 = sld [smem:[#allocation5 + %s131]]
    %s133 = scalar_lea.vmem [#allocation6], %s132
    %v134 = vld [vmem:[%s133] sm:$0x1]
    %135 = vst [vmem:[#allocation2 + $0xe] sm:$0x1] %v134
    %s136 = sadd.s32 %s55, 15
    %s137 = sld [smem:[#allocation5 + %s136]]
    %s138 = scalar_lea.vmem [#allocation6], %s137
    %v139 = vld [vmem:[%s138] sm:$0x1]
    %140 = vst [vmem:[#allocation2 + $0xf] sm:$0x1] %v139
    %v141 = vld [vmem:[#allocation2] sm:$0xff]
    %v142 = vld [vmem:[#allocation2 + $0x8] sm:$0xff]
    %v143 = vpack.c.bf16 %v142, %v141
    %v144 = vld [vmem:[#allocation9] sm:$0xff]
    %v145 = vld [vmem:[#allocation9 + $0x8] sm:$0xf]
    %v146 = vld [vmem:[#allocation9 + $0xc] sm:$0xff]
    %v147 = vld [vmem:[#allocation9 + $0x14] sm:$0xf]
    %v148 = vld [vmem:[#allocation9 + $0x18] sm:$0xff]
    %v149 = vld [vmem:[#allocation9 + $0x20] sm:$0xf]
    %v150 = vld [vmem:[#allocation9 + $0x24] sm:$0xff]
    %v151 = vld [vmem:[#allocation9 + $0x2c] sm:$0xf]
    %v152 = vld [vmem:[#allocation9 + $0x30] sm:$0xff]
    %v153 = vld [vmem:[#allocation9 + $0x38] sm:$0xf]
    %v154 = vld [vmem:[#allocation9 + $0x3c] sm:$0xff]
    %v155 = vld [vmem:[#allocation9 + $0x44] sm:$0xf]
    %v156 = vld [vmem:[#allocation9 + $0x48] sm:$0xff]
    %v157 = vld [vmem:[#allocation9 + $0x50] sm:$0xf]
    %v158 = vld [vmem:[#allocation9 + $0x54] sm:$0xff]
    %v159 = vld [vmem:[#allocation9 + $0x5c] sm:$0xf]
    %v160 = vld [vmem:[#allocation9 + $0x60] sm:$0xff]
    %v161 = vld [vmem:[#allocation9 + $0x68] sm:$0xf]
    %v162 = vld [vmem:[#allocation9 + $0x6c] sm:$0xff]
    %v163 = vld [vmem:[#allocation9 + $0x74] sm:$0xf]
    %v164 = vld [vmem:[#allocation9 + $0x78] sm:$0xff]
    %v165 = vld [vmem:[#allocation9 + $0x80] sm:$0xf]
    %v166 = vld [vmem:[#allocation9 + $0x84] sm:$0xff]
    %v167 = vld [vmem:[#allocation9 + $0x8c] sm:$0xf]
    %v168 = vld [vmem:[#allocation9 + $0x90] sm:$0xff]
    %v169 = vld [vmem:[#allocation9 + $0x98] sm:$0xf]
    %v170 = vld [vmem:[#allocation9 + $0x9c] sm:$0xff]
    %v171 = vld [vmem:[#allocation9 + $0xa4] sm:$0xf]
    %v172 = vld [vmem:[#allocation9 + $0xa8] sm:$0xff]
    %v173 = vld [vmem:[#allocation9 + $0xb0] sm:$0xf]
    %v174 = vld [vmem:[#allocation9 + $0xb4] sm:$0xff]
    %v175 = vld [vmem:[#allocation9 + $0xbc] sm:$0xf]
    %v208 = vunpack.c.l.b16 %v144
    %v209 = vunpack.c.h.b16 %v144
    %v210 = vunpack.c.l.b16 %v145
    %v211 = vunpack.c.l.b16 %v146
    %v212 = vunpack.c.h.b16 %v146
    %v213 = vunpack.c.l.b16 %v147
    %v214 = vunpack.c.l.b16 %v148
    %v215 = vunpack.c.h.b16 %v148
    %v216 = vunpack.c.l.b16 %v149
    %v217 = vunpack.c.l.b16 %v150
    %v218 = vunpack.c.h.b16 %v150
    %v219 = vunpack.c.l.b16 %v151
    %v220 = vunpack.c.l.b16 %v152
    %v221 = vunpack.c.h.b16 %v152
    %v222 = vunpack.c.l.b16 %v153
    %v223 = vunpack.c.l.b16 %v154
    %v224 = vunpack.c.h.b16 %v154
    %v225 = vunpack.c.l.b16 %v155
    %v226 = vunpack.c.l.b16 %v156
    %v227 = vunpack.c.h.b16 %v156
    %v228 = vunpack.c.l.b16 %v157
    %v229 = vunpack.c.l.b16 %v158
    %v230 = vunpack.c.h.b16 %v158
    %v231 = vunpack.c.l.b16 %v159
    %v232 = vunpack.c.l.b16 %v160
    %v233 = vunpack.c.h.b16 %v160
    %v234 = vunpack.c.l.b16 %v161
    %v235 = vunpack.c.l.b16 %v162
    %v236 = vunpack.c.h.b16 %v162
    %v237 = vunpack.c.l.b16 %v163
    %v238 = vunpack.c.l.b16 %v164
    %v239 = vunpack.c.h.b16 %v164
    %v240 = vunpack.c.l.b16 %v165
    %v241 = vunpack.c.l.b16 %v166
    %v242 = vunpack.c.h.b16 %v166
    %v243 = vunpack.c.l.b16 %v167
    %v244 = vunpack.c.l.b16 %v168
    %v245 = vunpack.c.h.b16 %v168
    %v246 = vunpack.c.l.b16 %v169
    %v247 = vunpack.c.l.b16 %v170
    %v248 = vunpack.c.h.b16 %v170
    %v249 = vunpack.c.l.b16 %v171
    %v250 = vunpack.c.l.b16 %v172
    %v251 = vunpack.c.h.b16 %v172
    %v252 = vunpack.c.l.b16 %v173
    %v253 = vunpack.c.l.b16 %v174
    %v254 = vunpack.c.h.b16 %v174
    %v255 = vunpack.c.l.b16 %v175
    %v256 = vpack.c.b16 %v211, %v208
    %v257 = vpack.c.b16 %v212, %v209
    %v258 = vpack.c.b16 %v213, %v210
    %v259 = vpack.c.b16 %v217, %v214
    %v260 = vpack.c.b16 %v218, %v215
    %v261 = vpack.c.b16 %v219, %v216
    %v262 = vpack.c.b16 %v223, %v220
    %v263 = vpack.c.b16 %v224, %v221
    %v264 = vpack.c.b16 %v225, %v222
    %v265 = vpack.c.b16 %v229, %v226
    %v266 = vpack.c.b16 %v230, %v227
    %v267 = vpack.c.b16 %v231, %v228
    %v268 = vpack.c.b16 %v235, %v232
    %v269 = vpack.c.b16 %v236, %v233
    %v270 = vpack.c.b16 %v237, %v234
    %v271 = vpack.c.b16 %v241, %v238
    %v272 = vpack.c.b16 %v242, %v239
    %v273 = vpack.c.b16 %v243, %v240
    %v274 = vpack.c.b16 %v247, %v244
    %v275 = vpack.c.b16 %v248, %v245
    %v276 = vpack.c.b16 %v249, %v246
    %v277 = vpack.c.b16 %v253, %v250
    %v278 = vpack.c.b16 %v254, %v251
    %v279 = vpack.c.b16 %v255, %v252
    %304 = vmatprep.subr.bf16.mxu0 %v257
    %305 = vmatpush1.bf16.msra.mxu0 %v256
    %306 = vmatprep.subr.bf16.mxu0 %v260
    %307 = vmatpush1.bf16.msra.mxu0 %v259
    %308 = vmatprep.subr.bf16.mxu0 %v263
    %309 = vmatpush1.bf16.msra.mxu0 %v262
    %310 = vmatprep.subr.bf16.mxu0 %v266
    %311 = vmatpush1.bf16.msra.mxu0 %v265
    %312 = vmatprep.subr.bf16.mxu0 %v269
    %313 = vmatpush1.bf16.msra.mxu0 %v268
    %314 = vmatprep.subr.bf16.mxu0 %v272
    %315 = vmatpush1.bf16.msra.mxu0 %v271
    %316 = vmatprep.subr.bf16.mxu0 %v275
    %317 = vmatpush1.bf16.msra.mxu0 %v274
    %318 = vmatprep.subr.bf16.mxu0 %v278
    %319 = vmatpush1.bf16.msra.mxu0 %v277
    %320 = vmatprep.subr.bf16.mxu0 0
    %321 = vmatpush1.bf16.msra.mxu0 0
    %322 = vmatprep.subr.bf16.mxu0 0
    %323 = vmatpush1.bf16.msra.mxu0 0
    %324 = vmatprep.subr.bf16.mxu0 0
    %325 = vmatpush1.bf16.msra.mxu0 0
    %326 = vmatprep.subr.bf16.mxu0 0
    %327 = vmatpush1.bf16.msra.mxu0 0
    %328 = vmatprep.subr.bf16.mxu0 0
    %329 = vmatpush1.bf16.msra.mxu0 0
    %330 = vmatprep.subr.bf16.mxu0 0
    %331 = vmatpush1.bf16.msra.mxu0 0
    %332 = vmatprep.subr.bf16.mxu0 0
    %333 = vmatpush1.bf16.msra.mxu0 0
    %334 = vmatprep.subr.bf16.mxu0 0
    %335 = vmatpush1.bf16.msra.mxu0 0
    %336 = vmatprep.mubr.bf16.mxu0 0
    %337 = vmatmul.mubr.bf16.gmra.mrb[0].mxu0 %v143
    %v338 = vpop.f32.mrb[0].mxu0
    %v339 = vadd.f32 0.0, %v338
    %v340 = vpop.f32.mrb[0].mxu0
    %v341 = vadd.f32 0.0, %v340
    %v342 = vpop.f32.mrb[0].mxu0
    %v343 = vadd.f32 0.0, %v342
    %v344 = vpop.f32.mrb[0].mxu0
    %v345 = vadd.f32 0.0, %v344
    %346 = vdwg.mxu0
    %347 = vmatprep.subr.bf16.mxu0 0
    %348 = vmatpush1.bf16.msra.mxu0 %v258
    %349 = vmatprep.subr.bf16.mxu0 0
    %350 = vmatpush1.bf16.msra.mxu0 %v261
    %351 = vmatprep.subr.bf16.mxu0 0
    %352 = vmatpush1.bf16.msra.mxu0 %v264
    %353 = vmatprep.subr.bf16.mxu0 0
    %354 = vmatpush1.bf16.msra.mxu0 %v267
    %355 = vmatprep.subr.bf16.mxu0 0
    %356 = vmatpush1.bf16.msra.mxu0 %v270
    %357 = vmatprep.subr.bf16.mxu0 0
    %358 = vmatpush1.bf16.msra.mxu0 %v273
    %359 = vmatprep.subr.bf16.mxu0 0
    %360 = vmatpush1.bf16.msra.mxu0 %v276
    %361 = vmatprep.subr.bf16.mxu0 0
    %362 = vmatpush1.bf16.msra.mxu0 %v279
    %363 = vmatprep.subr.bf16.mxu0 0
    %364 = vmatpush1.bf16.msra.mxu0 0
    %365 = vmatprep.subr.bf16.mxu0 0
    %366 = vmatpush1.bf16.msra.mxu0 0
    %367 = vmatprep.subr.bf16.mxu0 0
    %368 = vmatpush1.bf16.msra.mxu0 0
    %369 = vmatprep.subr.bf16.mxu0 0
    %370 = vmatpush1.bf16.msra.mxu0 0
    %371 = vmatprep.subr.bf16.mxu0 0
    %372 = vmatpush1.bf16.msra.mxu0 0
    %373 = vmatprep.subr.bf16.mxu0 0
    %374 = vmatpush1.bf16.msra.mxu0 0
    %375 = vmatprep.subr.bf16.mxu0 0
    %376 = vmatpush1.bf16.msra.mxu0 0
    %377 = vmatprep.subr.bf16.mxu0 0
    %378 = vmatpush1.bf16.msra.mxu0 0
    %379 = vmatprep.mubr.bf16.mxu0 0
    %380 = vmatmul.mubr.bf16.gmra.mrb[0].mxu0 %v143
    %v381 = vpop.f32.mrb[0].mxu0
    %v382 = vadd.f32 0.0, %v381
    %v383 = vpop.f32.mrb[0].mxu0
    %v384 = vpop.f32.mrb[0].mxu0
    %v385 = vadd.f32 0.0, %v384
    %v386 = vpop.f32.mrb[0].mxu0
    %387 = vdwg.mxu0
    %v388 = vld [vmem:[%s3] sm:$0x1]
    %v390 = vlaneseq
    %v391 = vshrl.u32 %v390, 7
    %v392 = vsub.s32 0, %v391
    %v393 = vrot.slane %v388, %v392
    %v395 = vadd.f32 %v341, %v393
    %v396 = vadd.f32 %v345, %v393
    %v397 = vxor.u32 %v395, 2147483648
    %v398 = vxor.u32 %v396, 2147483648
    %v399 = vmul.f32 %v397, 1.442695
    %v400 = vpow.pop %v399
    %v401 = vmul.f32 %v398, 1.442695
    %v402 = vpow.pop %v401
    %v403 = vadd.f32 %v400, 1.0
    %v404 = vadd.f32 %v402, 1.0
    %v405 = vrcp.pop %v403
    %v406 = vmul.f32 1.0, %v405
    %v407 = vrcp.pop %v404
    %v408 = vmul.f32 1.0, %v407
    %v409 = vld [vmem:[%s3 + $0x1] sm:$0x1]
    %v411 = vlaneseq
    %v412 = vshrl.u32 %v411, 7
    %v413 = vsub.s32 0, %v412
    %v414 = vrot.slane %v409, %v413
    %v416 = vadd.f32 %v382, %v414
    %v417 = vadd.f32 %v385, %v414
    %v418 = vxor.u32 %v416, 2147483648
    %v419 = vxor.u32 %v417, 2147483648
    %v420 = vmul.f32 %v418, 1.442695
    %v421 = vpow.pop %v420
    %v422 = vmul.f32 %v419, 1.442695
    %v423 = vpow.pop %v422
    %v424 = vadd.f32 %v421, 1.0
    %v425 = vadd.f32 %v423, 1.0
    %v426 = vrcp.pop %v424
    %v427 = vmul.f32 1.0, %v426
    %v428 = vrcp.pop %v425
    %v429 = vmul.f32 1.0, %v428
    %v430 = vlaneseq
    %v431 = vshrl.u32 %v430, 7
    %v432 = vadd.s32 %v431, 8
    %v433 = vstv %s55
    %v434 = vadd.s32 %v433, %v431
    %v435 = vadd.s32 %v433, %v432
    %vm436 = vcmp.lt.s32.totalorder %v434, 12
    %vm437 = vcmp.lt.s32.totalorder %v435, 12
    %v438 = vsel %vm436, %v406, 1.0
    %v439 = vsel %vm437, %v408, 1.0
    %v440 = vsub.f32 1.0, %v438
    %v441 = vsub.f32 1.0, %v439
    %v442 = vmul.f32 %v440, %v339
    %v443 = vmul.f32 %v441, %v343
    %v444 = vld [vmem:[#allocation12] sm:$0x1]
    %v445 = vmul.f32 %v438, %v444
    %v446 = vadd.f32 %v445, %v442
    %447 = vst [vmem:[#allocation3] sm:$0x1] %v446
    %v449 = vrot.slane %v446, 7
    %v451 = vmul.f32 %v438, %v449
    %v452 = vadd.f32 %v451, %v442
    %453 = vst [vmem:[#allocation3] sm:$0x2] %v452
    %v455 = vrot.slane %v452, 7
    %v457 = vmul.f32 %v438, %v455
    %v458 = vadd.f32 %v457, %v442
    %459 = vst [vmem:[#allocation3] sm:$0x4] %v458
    %v461 = vrot.slane %v458, 7
    %v463 = vmul.f32 %v438, %v461
    %v464 = vadd.f32 %v463, %v442
    %465 = vst [vmem:[#allocation3] sm:$0x8] %v464
    %v467 = vrot.slane %v464, 7
    %v469 = vmul.f32 %v438, %v467
    %v470 = vadd.f32 %v469, %v442
    %471 = vst [vmem:[#allocation3] sm:$0x10] %v470
    %v473 = vrot.slane %v470, 7
    %v475 = vmul.f32 %v438, %v473
    %v476 = vadd.f32 %v475, %v442
    %477 = vst [vmem:[#allocation3] sm:$0x20] %v476
    %v479 = vrot.slane %v476, 7
    %v481 = vmul.f32 %v438, %v479
    %v482 = vadd.f32 %v481, %v442
    %483 = vst [vmem:[#allocation3] sm:$0x40] %v482
    %v485 = vrot.slane %v482, 7
    %v487 = vmul.f32 %v438, %v485
    %v488 = vadd.f32 %v487, %v442
    %489 = vst [vmem:[#allocation3] sm:$0x80] %v488
    %v491 = vrot.slane %v488, 7
    %v493 = vmul.f32 %v439, %v491
    %v494 = vadd.f32 %v493, %v443
    %495 = vst [vmem:[#allocation3 + $0x8] sm:$0x1] %v494
    %v497 = vrot.slane %v494, 7
    %v499 = vmul.f32 %v439, %v497
    %v500 = vadd.f32 %v499, %v443
    %501 = vst [vmem:[#allocation3 + $0x8] sm:$0x2] %v500
    %v503 = vrot.slane %v500, 7
    %v505 = vmul.f32 %v439, %v503
    %v506 = vadd.f32 %v505, %v443
    %507 = vst [vmem:[#allocation3 + $0x8] sm:$0x4] %v506
    %v509 = vrot.slane %v506, 7
    %v511 = vmul.f32 %v439, %v509
    %v512 = vadd.f32 %v511, %v443
    %513 = vst [vmem:[#allocation3 + $0x8] sm:$0x8] %v512
    %v515 = vrot.slane %v512, 7
    %v517 = vmul.f32 %v439, %v515
    %v518 = vadd.f32 %v517, %v443
    %519 = vst [vmem:[#allocation3 + $0x8] sm:$0x10] %v518
    %v521 = vrot.slane %v518, 7
    %v523 = vmul.f32 %v439, %v521
    %v524 = vadd.f32 %v523, %v443
    %525 = vst [vmem:[#allocation3 + $0x8] sm:$0x20] %v524
    %v527 = vrot.slane %v524, 7
    %v529 = vmul.f32 %v439, %v527
    %v530 = vadd.f32 %v529, %v443
    %531 = vst [vmem:[#allocation3 + $0x8] sm:$0x40] %v530
    %v533 = vrot.slane %v530, 7
    %v535 = vmul.f32 %v439, %v533
    %v536 = vadd.f32 %v535, %v443
    %537 = vst [vmem:[#allocation3 + $0x8] sm:$0x80] %v536
    %538 = vst [vmem:[#allocation12 - $0x7] sm:$0x80] %v536
    %v539 = vld [vmem:[#allocation3] sm:$0xff]
    %v540 = vld [vmem:[#allocation3 + $0x8] sm:$0xff]
    %v541 = vtanh.pop %v539
    %v542 = vtanh.pop %v540
    %v543 = vmul.f32 %v427, %v541
    %v544 = vmul.f32 %v429, %v542
    %v545 = vsub.f32 1.0, %v427
    %v546 = vsub.f32 1.0, %v429
    %v547 = vmul.f32 %v545, %v141
    %v548 = vmul.f32 %v546, %v142
    %v549 = vadd.f32 %v543, %v547
    %v550 = vadd.f32 %v544, %v548
    %551 = vst [vmem:[#allocation11] sm:$0xff] %v549
    %552 = vst [vmem:[#allocation11 + $0x8] sm:$0xff] %v550
    // Predicated region
    $region30: #{tpu_custom_call.1} parent=1 // pred_check
      _
    $region31: #{tpu_custom_call.1} parent=1 // pred_check_branch
      %554 = sbr.rel (0) target = $region33
    $region32: #{tpu_custom_call.1} parent=1 // pred_region
      %s556 = ssub.s32 256, 256
      %557 = vsyncadd [#allocation8], %s556
      %s558 = sshll.u32 [#allocation11], 4
      %s559 = int_to_ptr.vmem [resolvable:$true] %s558
      %564 = dma.vmem_to_hbm [thread:$0]  %s559, 256, %s5, [#allocation8], 128, 128, 8
    $region33: #{tpu_custom_call.1} parent=1 // pred_fallthru
      _
    // Predicated region
    $region34: #{tpu_custom_call.1} parent=1 // pred_check
      _
    $region35: #{tpu_custom_call.1} parent=1 // pred_check_branch
      %566 = sbr.rel (0) target = $region37
    $region36: #{tpu_custom_call.1} parent=1 // pred_region
      %s568 = ssub.s32 16, 16
      %569 = vsyncadd [#allocation13], %s568
      %s571 = sshll.u32 [#allocation12], 4
      %s572 = int_to_ptr.vmem [resolvable:$true] %s571
      %574 = dma.vmem_to_hbm [thread:$0]  %s572, 16, %s6, [#allocation13]
    $region37: #{tpu_custom_call.1} parent=1 // pred_fallthru
      _
    // Predicated region
    $region38: #{tpu_custom_call.1} parent=1 // pred_check
      _
    $region39: #{tpu_custom_call.1} parent=1 // pred_check_branch
      %576 = sbr.rel (0) target = $region41
    $region40: #{tpu_custom_call.1} parent=1 // pred_region
      %577 = dma.done [#allocation8], 256
    $region41: #{tpu_custom_call.1} parent=1 // pred_fallthru
      _
    // Predicated region
    $region42: #{tpu_custom_call.1} parent=1 // pred_check
      _
    $region43: #{tpu_custom_call.1} parent=1 // pred_check_branch
      %579 = sbr.rel (0) target = $region45
    $region44: #{tpu_custom_call.1} parent=1 // pred_region
      %580 = dma.done [#allocation13], 16
    $region45: #{tpu_custom_call.1} parent=1 // pred_fallthru
      _
    %581 = vsyncpa [#allocation7], 1
    %582 = vsyncpa [#allocation10], 1
    %583 = vsyncpa [#allocation8], 1
    %584 = vsyncpa [#allocation13], 1

</llo_original>
